<compile_context>
chip_gen: v5e
topology: v5e:2x2
jax: 0.10.0
libtpu: 0.0.40
codegen_flags: <defaults>
</compile_context>

<pallas_src>
import functools
import math

import jax
import jax.numpy as jnp
from jax.experimental import pallas as pl
from jax.experimental.pallas import tpu as pltpu


# ----------------------------- Pallas kernel -------------------------------

def _std_kernel(x_ref, o_ref, *, n, ddof):
    """x_ref: (R, tn) tile, reduce axis on sublanes. o_ref: (1, tn), lane-dense."""
    x = x_ref[...]                                         # f32 (R, tn)
    mean = jnp.sum(x, axis=0, keepdims=True) * (1.0 / n)   # sublane reduce (XLU)
    d = x - mean
    ss = jnp.sum(d * d, axis=0, keepdims=True)
    denom = n - ddof
    if denom > 0:
        var = ss * (1.0 / denom)
    else:
        # dof <= 0: PyTorch returns NaN for unbiased std of a single sample.
        var = ss * jnp.float32(jnp.nan)
    o_ref[...] = jnp.sqrt(var)


# ------------------------------- Wrapper ------------------------------------

def std_layer(x, dim, *, unbiased=True, tn_max=2048):
    """Equivalent of torch.Tensor.std(dim=dim, keepdim=True) (unbiased by default)."""
    x = x.astype(jnp.float32)
    nd = x.ndim
    dim = dim % nd
    ddof = 1 if unbiased else 0

    # Move the reduced axis to the sublane axis; flatten the rest onto lanes.
    perm = (dim,) + tuple(i for i in range(nd) if i != dim)
    xt = jnp.transpose(x, perm)                 # (R, ...)
    R = xt.shape[0]
    rest_shape = xt.shape[1:]
    M = math.prod(rest_shape) if rest_shape else 1
    x2 = xt.reshape(R, M)

    # Lane tiling: lane-dense blocks (multiple of 128), big tiles, parallel grid.
    tn = min(tn_max, pl.cdiv(M, 128) * 128)
    Mp = pl.cdiv(M, tn) * tn
    if Mp != M:
        x2 = jnp.pad(x2, ((0, 0), (0, Mp - M)))  # zero columns only; sliced off

    kernel = functools.partial(_std_kernel, n=float(R), ddof=float(ddof))
    out = pl.pallas_call(
        kernel,
        out_shape=jax.ShapeDtypeStruct((1, Mp), jnp.float32),
        grid=(Mp // tn,),
        in_specs=[pl.BlockSpec((R, tn), lambda j: (0, j))],
        out_specs=pl.BlockSpec((1, tn), lambda j: (0, j)),
        compiler_params=pltpu.CompilerParams(
            dimension_semantics=("parallel",)),
    )(x2)

    # Restore original layout with keepdim=True (size-1 at `dim`).
    out = out[:, :M].reshape((1,) + rest_shape)
    inv = [0] * nd
    for i, p in enumerate(perm):
        inv[p] = i
    return jnp.transpose(out, inv)


# --------------------------------- Demo --------------------------------------

if __name__ == "__main__":
    key = jax.random.PRNGKey(0)
    x = jax.random.normal(key, (2, 4, 16, 16), jnp.float32)
    dim = 1                                      # StdLayer(dim=1)

    fwd = jax.jit(functools.partial(std_layer, dim=dim))
    out = jax.block_until_ready(fwd(x))

    ref = jnp.std(x, axis=dim, keepdims=True, ddof=1)   # PyTorch-default unbiased std
    assert out.shape == (2, 1, 16, 16) and out.dtype == jnp.float32
    assert bool(jnp.all(jnp.isfinite(out)))
    assert bool(jnp.allclose(out, ref, atol=1e-5, rtol=1e-5))
    print("KERNEL_OK")
</pallas_src>

<mosaic_0001>
module attributes {stable_mosaic.version = 11 : i64} {
  func.func @_std_kernel(%arg0: i32, %arg1: memref<4x512xf32, #tpu.memory_space<vmem>>, %arg2: memref<1x512xf32, #tpu.memory_space<vmem>>) attributes {dimension_semantics = [#tpu.dimension_semantics<parallel>], iteration_bounds = array<i64: 1>, scalar_prefetch = 0 : i64, scratch_operands = 0 : i64, tpu.core_type = #tpu.core_type<tc>, window_params = [{transform_indices = @transform_0, window_bounds = array<i64: 4, 512>}, {transform_indices = @transform_1, window_bounds = array<i64: 1, 512>}]} {
    %c0 = arith.constant 0 : index
    %c0_0 = arith.constant 0 : index
    %0 = vector.load %arg1[%c0, %c0_0] : memref<4x512xf32, #tpu.memory_space<vmem>>, vector<4x512xf32>
    %cst = arith.constant dense<0.000000e+00> : vector<512xf32>
    %1 = vector.multi_reduction <add>, %0, %cst [0] : vector<4x512xf32> to vector<512xf32>
    %2 = vector.shape_cast %1 : vector<512xf32> to vector<1x512xf32>
    %cst_1 = arith.constant 2.500000e-01 : f32
    %3 = vector.broadcast %cst_1 : f32 to vector<1x512xf32>
    %4 = arith.mulf %2, %3 : vector<1x512xf32>
    %5 = vector.broadcast %4 : vector<1x512xf32> to vector<4x512xf32>
    %6 = arith.subf %0, %5 : vector<4x512xf32>
    %7 = arith.mulf %6, %6 : vector<4x512xf32>
    %cst_2 = arith.constant dense<0.000000e+00> : vector<512xf32>
    %8 = vector.multi_reduction <add>, %7, %cst_2 [0] : vector<4x512xf32> to vector<512xf32>
    %9 = vector.shape_cast %8 : vector<512xf32> to vector<1x512xf32>
    %cst_3 = arith.constant 0.333333343 : f32
    %10 = vector.broadcast %cst_3 : f32 to vector<1x512xf32>
    %11 = arith.mulf %9, %10 : vector<1x512xf32>
    %12 = math.sqrt %11 : vector<1x512xf32>
    %c0_4 = arith.constant 0 : index
    %c0_5 = arith.constant 0 : index
    %13 = vector.load %arg2[%c0_4, %c0_5] : memref<1x512xf32, #tpu.memory_space<vmem>>, vector<1x512xf32>
    tpu.vector_store %arg2[%c0_4, %c0_5], %12 {strides = array<i32>} : memref<1x512xf32, #tpu.memory_space<vmem>>, vector<1x512xf32>,
    return
  }
  func.func @transform_0(%arg0: i32) -> (i32, i32) {
    %c0_i32 = arith.constant 0 : i32
    %c0_i32_0 = arith.constant 0 : i32
    return %c0_i32, %arg0 : i32, i32
  }
  func.func @transform_1(%arg0: i32) -> (i32, i32) {
    %c0_i32 = arith.constant 0 : i32
    %c0_i32_0 = arith.constant 0 : i32
    return %c0_i32, %arg0 : i32, i32
  }
}

</mosaic_0001>

<llo_original>
// kernel: std_layer.1
$region0: #{std_layer.1}
  #allocation0 [shape = 'u32[]', space=smem, size = 0x4, offset = 0x4, fixed_abs, tag = 'smem constant byte address 0x4 - core index']
  #allocation1 [shape = 'u32[72,128]{1,0:T(1,128)}', space=vmem, size = 0x9000, scoped, tag = 'internal scratch']
  %s0 = inlined_call_operand.vmem [shape: f32[4,512], index: 0, kind: input, shape index: {}]
  %s1 = inlined_call_operand.vmem [shape: f32[1,512], index: 1, kind: output, shape index: {}]
  %s2 = sld [smem:[#allocation0]]
  $region14: #{std_layer.1} parent=0
    _
  %s4 = ssub.s32 1, %s2
  %s5 = scalar_select 0, %s4, %s2
  // Predicated region
  $region2: #{std_layer.1} parent=0 // pred_check
    _
  $region3: #{std_layer.1} parent=0 // pred_check_branch
    %7 = sbr.rel (0) target = $region5
  $region4: #{std_layer.1} parent=0 // pred_region
    _
  $region5: #{std_layer.1} parent=0 // pred_fallthru
    _
  %v8 = vld [vmem:[%s0] sm:$0xff]
  %v9 = vld [vmem:[%s0 + $0x8] sm:$0xff]
  %12 = vst [vmem:[#allocation1] ss:$2 sm:$0xff] %v8
  %s13 = scalar_lea.vmem [#allocation1], 16
  %14 = vst [vmem:[%s13] ss:$2 sm:$0xff] %v9
  %v15 = vld.sshfl [vmem:[#allocation1] sm:$0xff pattern:$0x75316420]
  %v16 = vld.sshfl [vmem:[#allocation1 + $0x8] sm:$0xff pattern:$0x75316420]
  %v17 = vld.sshfl [vmem:[#allocation1 + $0x10] sm:$0xff pattern:$0x75316420]
  %v18 = vld.sshfl [vmem:[#allocation1 + $0x18] sm:$0xff pattern:$0x75316420]
  %vm23 = vcmask 1043456
  %v24 = vsel %vm23, %v15, 0.0
  %v25 = vrot.slane %v24, 4
  %v26 = vadd.f32 %v24, %v25
  %v27 = vrot.slane %v26, 2
  %v28 = vadd.f32 %v26, %v27
  %v29 = vrot.slane %v28, 1
  %v30 = vadd.f32 %v28, %v29
  %v31 = vsel %vm23, %v16, 0.0
  %v32 = vrot.slane %v31, 4
  %v33 = vadd.f32 %v31, %v32
  %v34 = vrot.slane %v33, 2
  %v35 = vadd.f32 %v33, %v34
  %v36 = vrot.slane %v35, 1
  %v37 = vadd.f32 %v35, %v36
  %v38 = vsel %vm23, %v17, 0.0
  %v39 = vrot.slane %v38, 4
  %v40 = vadd.f32 %v38, %v39
  %v41 = vrot.slane %v40, 2
  %v42 = vadd.f32 %v40, %v41
  %v43 = vrot.slane %v42, 1
  %v44 = vadd.f32 %v42, %v43
  %v45 = vsel %vm23, %v18, 0.0
  %v46 = vrot.slane %v45, 4
  %v47 = vadd.f32 %v45, %v46
  %v48 = vrot.slane %v47, 2
  %v49 = vadd.f32 %v47, %v48
  %v50 = vrot.slane %v49, 1
  %v51 = vadd.f32 %v49, %v50
  %v52 = vmul.f32 %v30, 0.25
  %v53 = vmul.f32 %v37, 0.25
  %v54 = vmul.f32 %v44, 0.25
  %v55 = vmul.f32 %v51, 0.25
  %v60 = vrot.slane %v53, 4
  %v61 = vrot.slane %v55, 4
  %v62 = vsel %vm23, %v52, %v60
  %v63 = vsel %vm23, %v54, %v61
  %v66 = vsub.f32 %v8, %v62
  %v67 = vsub.f32 %v9, %v63
  %v68 = vmul.f32 %v66, %v66
  %v69 = vmul.f32 %v67, %v67
  %72 = vst [vmem:[#allocation1] ss:$2 sm:$0xff] %v68
  %s73 = scalar_lea.vmem [#allocation1], 16
  %74 = vst [vmem:[%s73] ss:$2 sm:$0xff] %v69
  %v75 = vld.sshfl [vmem:[#allocation1] sm:$0xff pattern:$0x75316420]
  %v76 = vld.sshfl [vmem:[#allocation1 + $0x8] sm:$0xff pattern:$0x75316420]
  %v77 = vld.sshfl [vmem:[#allocation1 + $0x10] sm:$0xff pattern:$0x75316420]
  %v78 = vld.sshfl [vmem:[#allocation1 + $0x18] sm:$0xff pattern:$0x75316420]
  %v83 = vsel %vm23, %v75, 0.0
  %v84 = vrot.slane %v83, 4
  %v85 = vadd.f32 %v83, %v84
  %v86 = vrot.slane %v85, 2
  %v87 = vadd.f32 %v85, %v86
  %v88 = vrot.slane %v87, 1
  %v89 = vadd.f32 %v87, %v88
  %v90 = vsel %vm23, %v76, 0.0
  %v91 = vrot.slane %v90, 4
  %v92 = vadd.f32 %v90, %v91
  %v93 = vrot.slane %v92, 2
  %v94 = vadd.f32 %v92, %v93
  %v95 = vrot.slane %v94, 1
  %v96 = vadd.f32 %v94, %v95
  %v97 = vsel %vm23, %v77, 0.0
  %v98 = vrot.slane %v97, 4
  %v99 = vadd.f32 %v97, %v98
  %v100 = vrot.slane %v99, 2
  %v101 = vadd.f32 %v99, %v100
  %v102 = vrot.slane %v101, 1
  %v103 = vadd.f32 %v101, %v102
  %v104 = vsel %vm23, %v78, 0.0
  %v105 = vrot.slane %v104, 4
  %v106 = vadd.f32 %v104, %v105
  %v107 = vrot.slane %v106, 2
  %v108 = vadd.f32 %v106, %v107
  %v109 = vrot.slane %v108, 1
  %v110 = vadd.f32 %v108, %v109
  %v111 = vmul.f32 %v89, 0.33333334
  %v112 = vmul.f32 %v96, 0.33333334
  %v113 = vmul.f32 %v103, 0.33333334
  %v114 = vmul.f32 %v110, 0.33333334
  %v115 = vrsqrt.pop %v111
  %v116 = vmul.f32 %v115, %v111
  %v117 = vmul.f32 %v116, %v115
  %v118 = vmul.f32 0.5, %v117
  %v119 = vsub.f32 1.5, %v118
  %v120 = vmul.f32 %v115, %v119
  %v121 = vmul.f32 %v111, %v120
  %vm122 = vcmp.eq.f32.partialorder %v111, inf
  %v123 = vsel %vm122, %v111, %v121
  %vm124 = vcmp.eq.f32.partialorder %v111, 0.0
  %v125 = vand.u32 %v111, 2147483648
  %v126 = vsel %vm124, %v125, %v123
  %v127 = vrsqrt.pop %v112
  %v128 = vmul.f32 %v127, %v112
  %v129 = vmul.f32 %v128, %v127
  %v130 = vmul.f32 0.5, %v129
  %v131 = vsub.f32 1.5, %v130
  %v132 = vmul.f32 %v127, %v131
  %v133 = vmul.f32 %v112, %v132
  %vm134 = vcmp.eq.f32.partialorder %v112, inf
  %v135 = vsel %vm134, %v112, %v133
  %vm136 = vcmp.eq.f32.partialorder %v112, 0.0
  %v137 = vand.u32 %v112, 2147483648
  %v138 = vsel %vm136, %v137, %v135
  %v139 = vrsqrt.pop %v113
  %v140 = vmul.f32 %v139, %v113
  %v141 = vmul.f32 %v140, %v139
  %v142 = vmul.f32 0.5, %v141
  %v143 = vsub.f32 1.5, %v142
  %v144 = vmul.f32 %v139, %v143
  %v145 = vmul.f32 %v113, %v144
  %vm146 = vcmp.eq.f32.partialorder %v113, inf
  %v147 = vsel %vm146, %v113, %v145
  %vm148 = vcmp.eq.f32.partialorder %v113, 0.0
  %v149 = vand.u32 %v113, 2147483648
  %v150 = vsel %vm148, %v149, %v147
  %v151 = vrsqrt.pop %v114
  %v152 = vmul.f32 %v151, %v114
  %v153 = vmul.f32 %v152, %v151
  %v154 = vmul.f32 0.5, %v153
  %v155 = vsub.f32 1.5, %v154
  %v156 = vmul.f32 %v151, %v155
  %v157 = vmul.f32 %v114, %v156
  %vm158 = vcmp.eq.f32.partialorder %v114, inf
  %v159 = vsel %vm158, %v114, %v157
  %vm160 = vcmp.eq.f32.partialorder %v114, 0.0
  %v161 = vand.u32 %v114, 2147483648
  %v162 = vsel %vm160, %v161, %v159
  %v167 = vrot.slane %v138, 7
  %v168 = vrot.slane %v150, 6
  %v169 = vrot.slane %v162, 5
  %vm170 = vcmask 1040384
  %v171 = vsel %vm170, %v126, %v167
  %vm172 = vcmask 1042434
  %v173 = vsel %vm172, %v168, %v169
  %vm174 = vcmask 1041408
  %v175 = vsel %vm174, %v171, %v173
  %v177 = vlaneseq
  %vm178 = vcmp.ge.s32.totalorder %v177, 0
  %vm179 = vcmp.lt.s32.totalorder %v177, 512
  %vm180 = vmand %vm178, %vm179
  %181 = vst.msk [vmem:[%s1] sm:$0xf] %vm180, %v175
  // Predicated region
  $region6: #{std_layer.1} parent=0 // pred_check
    _
  $region7: #{std_layer.1} parent=0 // pred_check_branch
    %183 = sbr.rel (0) target = $region9
  $region8: #{std_layer.1} parent=0 // pred_region
    _
  $region9: #{std_layer.1} parent=0 // pred_fallthru
    _
  // Predicated region
  $region10: #{std_layer.1} parent=0 // pred_check
    _
  $region11: #{std_layer.1} parent=0 // pred_check_branch
    %185 = sbr.rel (0) target = $region13
  $region12: #{std_layer.1} parent=0 // pred_region
    _
  $region13: #{std_layer.1} parent=0 // pred_fallthru
    _

</llo_original>
